<compile_context>
chip_gen: v6e
topology: v6e:2x2x1
jax: 0.10.0
libtpu: 0.0.40
codegen_flags: <defaults>
</compile_context>

<pallas_src>
import jax
import jax.numpy as jnp
from jax.experimental import pallas as pl
from jax.experimental.pallas import tpu as pltpu

IN_FEATURES = 128
OUT_FEATURES = 256

# Constants from the PyTorch spec (min_value = 1, max_value = 1).
MIN_VALUE = 1.0
MAX_VALUE = 1.0


def _round_up(n, m):
    return ((n + m - 1) // m) * m


def _make_kernel(min_value, max_value, compute_dtype):
    def kernel(x_ref, w_ref, b_ref, o_ref):
        # x_ref: (TM, 128), w_ref: (128, 256), b_ref: (1, 256), o_ref: (TM, 256)
        x = x_ref[...]
        w = w_ref[...]
        if compute_dtype is not None:
            # In-kernel cast: zero extra HBM traffic, single-pass MXU on v5e.
            x = x.astype(compute_dtype)
            w = w.astype(compute_dtype)
        acc = jnp.dot(x, w, preferred_element_type=jnp.float32)
        acc = acc + b_ref[...]                  # fp32 bias broadcast over rows
        acc = jnp.maximum(acc, min_value)       # torch.clamp_min
        acc = jnp.minimum(acc, max_value)       # torch.clamp_max
        o_ref[...] = acc.astype(o_ref.dtype)
    return kernel


def linear_clamp(x, w, b, *, min_value=MIN_VALUE, max_value=MAX_VALUE,
                 tm=2048, compute_dtype=None, out_dtype=None):
    """Fused Linear(128 -> 256) + clamp_min + clamp_max.

    tm:            rows per grid step (rounded to a multiple of 8).
    compute_dtype: optional in-kernel cast of x / w (e.g. jnp.bfloat16);
                   accumulation, bias and clamps stay fp32.
    out_dtype:     optional output dtype (defaults to x.dtype).
    """
    M, K = x.shape
    assert K == IN_FEATURES, f"expected {IN_FEATURES} input features, got {K}"
    assert w.shape == (IN_FEATURES, OUT_FEATURES)
    assert b.shape == (OUT_FEATURES,)

    out_dtype = x.dtype if out_dtype is None else out_dtype

    # Trace-time fast path: if min >= max then
    #   clamp_max(clamp_min(v, min), max) == max  for every element,
    # so the matmul result is provably discarded.  (Module spec: min=max=1.)
    if float(min_value) >= float(max_value):
        return jnp.full((M, OUT_FEATURES), float(max_value), dtype=out_dtype)

    b2 = b.reshape(1, OUT_FEATURES).astype(jnp.float32)

    # Row tile: multiple of 8 (sublane); no padding / post-slicing -- the
    # trailing partial block is handled (masked) by Pallas.  For mid-size M,
    # keep >= 2 grid steps so dimension_semantics=('parallel',) can shard
    # rows across both TensorCores on v7x.
    tm_req = max(8, _round_up(int(tm), 8))
    if M >= 2 * tm_req:
        tm_eff = tm_req
    elif M >= 256:
        tm_eff = _round_up(pl.cdiv(M, 2), 8)
    else:
        tm_eff = min(tm_req, _round_up(M, 8))
    grid = pl.cdiv(M, tm_eff)

    cost = pl.CostEstimate(
        flops=2 * M * IN_FEATURES * OUT_FEATURES,
        transcendentals=0,
        bytes_accessed=(M * IN_FEATURES * jnp.dtype(x.dtype).itemsize
                        + IN_FEATURES * OUT_FEATURES * jnp.dtype(w.dtype).itemsize
                        + OUT_FEATURES * 4
                        + M * OUT_FEATURES * jnp.dtype(out_dtype).itemsize),
    )

    return pl.pallas_call(
        _make_kernel(float(min_value), float(max_value), compute_dtype),
        out_shape=jax.ShapeDtypeStruct((M, OUT_FEATURES), out_dtype),
        grid_spec=pltpu.PrefetchScalarGridSpec(
            num_scalar_prefetch=0,
            grid=(grid,),
            in_specs=[
                pl.BlockSpec((tm_eff, IN_FEATURES), lambda i: (i, 0)),
                pl.BlockSpec((IN_FEATURES, OUT_FEATURES), lambda i: (0, 0)),
                pl.BlockSpec((1, OUT_FEATURES), lambda i: (0, 0)),
            ],
            out_specs=pl.BlockSpec((tm_eff, OUT_FEATURES), lambda i: (i, 0)),
        ),
        compiler_params=pltpu.CompilerParams(
            dimension_semantics=("parallel",),
        ),
        cost_estimate=cost,
    )(x, w, b2)


if __name__ == "__main__":
    key = jax.random.PRNGKey(0)
    kx, kw, kb, kx2 = jax.random.split(key, 4)

    # Parameter init mimics torch's uniform(-1/sqrt(fan_in), 1/sqrt(fan_in)).
    bound = 1.0 / (IN_FEATURES ** 0.5)
    w = jax.random.uniform(kw, (IN_FEATURES, OUT_FEATURES), jnp.float32, -bound, bound)
    b = jax.random.uniform(kb, (OUT_FEATURES,), jnp.float32, -bound, bound)

    # Small batch consistent with nn.Linear(128, 256).
    x_small = jax.random.normal(kx, (8, IN_FEATURES), dtype=jnp.float32)

    # 1) Module spec (min_value = max_value = 1): constant-output fast path.
    out_spec = linear_clamp(x_small, w, b)
    jax.block_until_ready(out_spec)
    assert out_spec.shape == (8, OUT_FEATURES)
    assert bool(jnp.all(out_spec == 1.0))

    # 2) General fused matmul + clamp kernel (non-degenerate clamps).
    out_gen = linear_clamp(x_small, w, b, min_value=-0.5, max_value=0.5)
    jax.block_until_ready(out_gen)
    ref_gen = jnp.minimum(jnp.maximum(x_small @ w + b, -0.5), 0.5)
    assert jnp.allclose(out_gen, ref_gen, atol=1e-5, rtol=1e-5)

    # 3) Ragged M: multi-step grid + masked partial trailing block (no pad/slice).
    x_rag = jax.random.normal(kx2, (200, IN_FEATURES), dtype=jnp.float32)
    out_rag = linear_clamp(x_rag, w, b, min_value=-0.5, max_value=0.5, tm=64)
    jax.block_until_ready(out_rag)
    ref_rag = jnp.minimum(jnp.maximum(x_rag @ w + b, -0.5), 0.5)
    assert out_rag.shape == (200, OUT_FEATURES)
    assert jnp.allclose(out_rag, ref_rag, atol=1e-5, rtol=1e-5)

    # 4) In-kernel bf16 compute path (v5e MXU relief; no extra HBM traffic).
    out_bf16 = linear_clamp(x_rag, w, b, min_value=-0.5, max_value=0.5,
                            tm=64, compute_dtype=jnp.bfloat16)
    jax.block_until_ready(out_bf16)
    assert jnp.allclose(out_bf16, ref_rag, atol=2e-2, rtol=2e-2)

    print("KERNEL_OK")
</pallas_src>

<mosaic_0001>
module attributes {stable_mosaic.version = 11 : i64} {
  func.func @kernel(%arg0: i32, %arg1: memref<8x128xf32, #tpu.memory_space<vmem>>, %arg2: memref<128x256xf32, #tpu.memory_space<vmem>>, %arg3: memref<1x256xf32, #tpu.memory_space<vmem>>, %arg4: memref<8x256xf32, #tpu.memory_space<vmem>>) attributes {dimension_semantics = [#tpu.dimension_semantics<parallel>], iteration_bounds = array<i64: 1>, scalar_prefetch = 0 : i64, scratch_operands = 0 : i64, tpu.core_type = #tpu.core_type<tc>, window_params = [{transform_indices = @transform_0, window_bounds = array<i64: 8, 128>}, {pipeline_mode = #tpu.pipeline_mode<synchronous>, transform_indices = @transform_1, window_bounds = array<i64: 128, 256>}, {pipeline_mode = #tpu.pipeline_mode<synchronous>, transform_indices = @transform_2, window_bounds = array<i64: 1, 256>}, {transform_indices = @transform_3, window_bounds = array<i64: 8, 256>}]} {
    %c0 = arith.constant 0 : index
    %c0_0 = arith.constant 0 : index
    %0 = vector.load %arg1[%c0, %c0_0] : memref<8x128xf32, #tpu.memory_space<vmem>>, vector<8x128xf32>
    %c0_1 = arith.constant 0 : index
    %c0_2 = arith.constant 0 : index
    %1 = vector.load %arg2[%c0_1, %c0_2] : memref<128x256xf32, #tpu.memory_space<vmem>>, vector<128x256xf32>
    %cst = arith.constant dense<0.000000e+00> : vector<8x256xf32>
    %2 = tpu.matmul %0, %1, %cst {dimension_numbers = #tpu.dot_dimension_numbers<[1], [0], [0], [1], [0, 0, 1, 1], [], []>} : vector<8x128xf32>, vector<128x256xf32>, vector<8x256xf32> -> vector<8x256xf32>
    %c0_3 = arith.constant 0 : index
    %c0_4 = arith.constant 0 : index
    %3 = vector.load %arg3[%c0_3, %c0_4] : memref<1x256xf32, #tpu.memory_space<vmem>>, vector<1x256xf32>
    %4 = vector.broadcast %3 : vector<1x256xf32> to vector<8x256xf32>
    %5 = arith.addf %2, %4 : vector<8x256xf32>
    %cst_5 = arith.constant -5.000000e-01 : f32
    %6 = vector.broadcast %cst_5 : f32 to vector<8x256xf32>
    %7 = arith.maximumf %5, %6 : vector<8x256xf32>
    %cst_6 = arith.constant 5.000000e-01 : f32
    %8 = vector.broadcast %cst_6 : f32 to vector<8x256xf32>
    %9 = arith.minimumf %7, %8 : vector<8x256xf32>
    %c0_7 = arith.constant 0 : index
    %c0_8 = arith.constant 0 : index
    %10 = vector.load %arg4[%c0_7, %c0_8] : memref<8x256xf32, #tpu.memory_space<vmem>>, vector<8x256xf32>
    tpu.vector_store %arg4[%c0_7, %c0_8], %9 {strides = array<i32>} : memref<8x256xf32, #tpu.memory_space<vmem>>, vector<8x256xf32>,
    return
  }
  func.func @transform_0(%arg0: i32) -> (i32, i32) {
    %c0_i32 = arith.constant 0 : i32
    %c0_i32_0 = arith.constant 0 : i32
    return %arg0, %c0_i32 : i32, i32
  }
  func.func @transform_1(%arg0: i32) -> (i32, i32) {
    %c0_i32 = arith.constant 0 : i32
    %c0_i32_0 = arith.constant 0 : i32
    %c0_i32_1 = arith.constant 0 : i32
    return %c0_i32, %c0_i32_0 : i32, i32
  }
  func.func @transform_2(%arg0: i32) -> (i32, i32) {
    %c0_i32 = arith.constant 0 : i32
    %c0_i32_0 = arith.constant 0 : i32
    %c0_i32_1 = arith.constant 0 : i32
    return %c0_i32, %c0_i32_0 : i32, i32
  }
  func.func @transform_3(%arg0: i32) -> (i32, i32) {
    %c0_i32 = arith.constant 0 : i32
    %c0_i32_0 = arith.constant 0 : i32
    return %arg0, %c0_i32 : i32, i32
  }
}

</mosaic_0001>

<llo_original>
// kernel: tpu_custom_call.1
$region0: #{tpu_custom_call.1}
  #allocation0 [shape = 'u32[]', space=smem, size = 0x4, offset = 0x4, fixed_abs, tag = 'smem constant byte address 0x4 - core index']
  #allocation1 [shape = 'u32[144,128]{1,0:T(1,128)}', space=vmem, size = 0x12000, scoped, tag = 'internal scratch']
  %s0 = inlined_call_operand.hbm [shape: f32[8,128], index: 0, kind: input, shape index: {}]
  %s1 = inlined_call_operand.hbm [shape: f32[128,256], index: 1, kind: input, shape index: {}]
  %s2 = inlined_call_operand.vmem [shape: f32[1,256], index: 2, kind: input, shape index: {}]
  %s3 = inlined_call_operand.hbm [shape: f32[8,256], index: 3, kind: output, shape index: {}]
  %s4 = sld [smem:[#allocation0]]
  $region30: #{tpu_custom_call.1} parent=0
    _
  %s6 = ssub.s32 1, %s4
  %s7 = scalar_select 0, %s6, %s4
  $region1: #{tpu_custom_call.1} parent=0
    #allocation2 [shape = 'u8[4096]{0}', space=vmem, size = 0x1000, scoped, tag = 'input window, operand 0, single buffered']
    #allocation3 [shape = 's32[1]{0}', space=sflag, size = 0x4, scoped, tag = 'scoped memory for tpu_custom_call.1']
    #allocation4 [shape = 's32[1]{0}', space=sflag, size = 0x4, scoped, tag = 'scoped memory for tpu_custom_call.1']
    #allocation5 [shape = 'u8[131072]{0}', space=vmem, size = 0x20000, scoped, tag = 'input window, operand 1, single buffered']
    #allocation6 [shape = 's32[1]{0}', space=sflag, size = 0x4, scoped, tag = 'scoped memory for tpu_custom_call.1']
    #allocation7 [shape = 'u8[8192]{0}', space=vmem, size = 0x2000, scoped, tag = 'output window, operand 0, single buffered']
    %8 = vsyncpa [#allocation3], 0
    %9 = vsyncpa [#allocation6], 0
    %10 = vsyncpa [#allocation4], 0
    // Predicated region
    $region2: #{tpu_custom_call.1} parent=1 // pred_check
      _
    $region3: #{tpu_custom_call.1} parent=1 // pred_check_branch
      %12 = sbr.rel (0) target = $region5
    $region4: #{tpu_custom_call.1} parent=1 // pred_region
      %s14 = ssub.s32 128, 128
      %15 = vsyncadd [#allocation3], %s14
      %s17 = sshll.u32 [#allocation2], 4
      %s18 = int_to_ptr.vmem [resolvable:$true] %s17
      %20 = dma.hbm_to_vmem [thread:$0]  %s0, 128, %s18, [#allocation3]
    $region5: #{tpu_custom_call.1} parent=1 // pred_fallthru
      _
    // Predicated region
    $region6: #{tpu_custom_call.1} parent=1 // pred_check
      _
    $region7: #{tpu_custom_call.1} parent=1 // pred_check_branch
      %22 = sbr.rel (0) target = $region9
    $region8: #{tpu_custom_call.1} parent=1 // pred_region
      %s24 = ssub.s32 4096, 4096
      %25 = vsyncadd [#allocation6], %s24
      %s26 = sshll.u32 [#allocation5], 4
      %s27 = int_to_ptr.vmem [resolvable:$true] %s26
      %32 = dma.hbm_to_vmem [thread:$0]  %s1, 4096, %s27, [#allocation6], 256, 256, 16
    $region9: #{tpu_custom_call.1} parent=1 // pred_fallthru
      _
    // Predicated region
    $region10: #{tpu_custom_call.1} parent=1 // pred_check
      _
    $region11: #{tpu_custom_call.1} parent=1 // pred_check_branch
      %34 = sbr.rel (0) target = $region13
    $region12: #{tpu_custom_call.1} parent=1 // pred_region
      _
    $region13: #{tpu_custom_call.1} parent=1 // pred_fallthru
      _
    // Predicated region
    $region14: #{tpu_custom_call.1} parent=1 // pred_check
      _
    $region15: #{tpu_custom_call.1} parent=1 // pred_check_branch
      %36 = sbr.rel (0) target = $region17
    $region16: #{tpu_custom_call.1} parent=1 // pred_region
      %37 = dma.done [#allocation3], 128
    $region17: #{tpu_custom_call.1} parent=1 // pred_fallthru
      _
    // Predicated region
    $region18: #{tpu_custom_call.1} parent=1 // pred_check
      _
    $region19: #{tpu_custom_call.1} parent=1 // pred_check_branch
      %39 = sbr.rel (0) target = $region21
    $region20: #{tpu_custom_call.1} parent=1 // pred_region
      %40 = dma.done [#allocation6], 4096
    $region21: #{tpu_custom_call.1} parent=1 // pred_fallthru
      _
    %v41 = vld [vmem:[#allocation2] sm:$0xff]
    %v42 = vld [vmem:[#allocation5] sm:$0xff]
    %v43 = vld [vmem:[#allocation5 + $0x8] sm:$0xff]
    %v44 = vld [vmem:[#allocation5 + $0x10] sm:$0xff]
    %v45 = vld [vmem:[#allocation5 + $0x18] sm:$0xff]
    %v46 = vld [vmem:[#allocation5 + $0x20] sm:$0xff]
    %v47 = vld [vmem:[#allocation5 + $0x28] sm:$0xff]
    %v48 = vld [vmem:[#allocation5 + $0x30] sm:$0xff]
    %v49 = vld [vmem:[#allocation5 + $0x38] sm:$0xff]
    %v50 = vld [vmem:[#allocation5 + $0x40] sm:$0xff]
    %v51 = vld [vmem:[#allocation5 + $0x48] sm:$0xff]
    %v52 = vld [vmem:[#allocation5 + $0x50] sm:$0xff]
    %v53 = vld [vmem:[#allocation5 + $0x58] sm:$0xff]
    %v54 = vld [vmem:[#allocation5 + $0x60] sm:$0xff]
    %v55 = vld [vmem:[#allocation5 + $0x68] sm:$0xff]
    %v56 = vld [vmem:[#allocation5 + $0x70] sm:$0xff]
    %v57 = vld [vmem:[#allocation5 + $0x78] sm:$0xff]
    %v58 = vld [vmem:[#allocation5 + $0x80] sm:$0xff]
    %v59 = vld [vmem:[#allocation5 + $0x88] sm:$0xff]
    %v60 = vld [vmem:[#allocation5 + $0x90] sm:$0xff]
    %v61 = vld [vmem:[#allocation5 + $0x98] sm:$0xff]
    %v62 = vld [vmem:[#allocation5 + $0xa0] sm:$0xff]
    %v63 = vld [vmem:[#allocation5 + $0xa8] sm:$0xff]
    %v64 = vld [vmem:[#allocation5 + $0xb0] sm:$0xff]
    %v65 = vld [vmem:[#allocation5 + $0xb8] sm:$0xff]
    %v66 = vld [vmem:[#allocation5 + $0xc0] sm:$0xff]
    %v67 = vld [vmem:[#allocation5 + $0xc8] sm:$0xff]
    %v68 = vld [vmem:[#allocation5 + $0xd0] sm:$0xff]
    %v69 = vld [vmem:[#allocation5 + $0xd8] sm:$0xff]
    %v70 = vld [vmem:[#allocation5 + $0xe0] sm:$0xff]
    %v71 = vld [vmem:[#allocation5 + $0xe8] sm:$0xff]
    %v72 = vld [vmem:[#allocation5 + $0xf0] sm:$0xff]
    %v73 = vld [vmem:[#allocation5 + $0xf8] sm:$0xff]
    %v74 = vld [vmem:[%s2] sm:$0x3]
    %v76 = vlaneseq
    %v77 = vshrl.u32 %v76, 7
    %v78 = vsub.s32 0, %v77
    %v79 = vrot.slane %v74, %v78
    %v80 = vlaneseq
    %v81 = vshrl.u32 %v80, 7
    %v82 = vsub.s32 1, %v81
    %v83 = vrot.slane %v74, %v82
    %86 = vmatprep.subr.mxu0 %v73
    %87 = vmatpush1.msra.mxu0 %v72
    %88 = vmatprep.subr.mxu0 %v71
    %89 = vmatpush1.msra.mxu0 %v70
    %90 = vmatprep.subr.mxu0 %v69
    %91 = vmatpush1.msra.mxu0 %v68
    %92 = vmatprep.subr.mxu0 %v67
    %93 = vmatpush1.msra.mxu0 %v66
    %94 = vmatprep.subr.mxu0 %v65
    %95 = vmatpush1.msra.mxu0 %v64
    %96 = vmatprep.subr.mxu0 %v63
    %97 = vmatpush1.msra.mxu0 %v62
    %98 = vmatprep.subr.mxu0 %v61
    %99 = vmatpush1.msra.mxu0 %v60
    %100 = vmatprep.subr.mxu0 %v59
    %101 = vmatpush1.msra.mxu0 %v58
    %102 = vmatprep.subr.mxu0 %v57
    %103 = vmatpush1.msra.mxu0 %v56
    %104 = vmatprep.subr.mxu0 %v55
    %105 = vmatpush1.msra.mxu0 %v54
    %106 = vmatprep.subr.mxu0 %v53
    %107 = vmatpush1.msra.mxu0 %v52
    %108 = vmatprep.subr.mxu0 %v51
    %109 = vmatpush1.msra.mxu0 %v50
    %110 = vmatprep.subr.mxu0 %v49
    %111 = vmatpush1.msra.mxu0 %v48
    %112 = vmatprep.subr.mxu0 %v47
    %113 = vmatpush1.msra.mxu0 %v46
    %114 = vmatprep.subr.mxu0 %v45
    %115 = vmatpush1.msra.mxu0 %v44
    %116 = vmatprep.subr.mxu0 %v43
    %117 = vmatpush1.msra.mxu0 %v42
    %118 = vmatprep.subr.mxu0 0.0
    %119 = vmatpush2.msra.mxu0 0.0
    %120 = vmatprep.subr.mxu0 0.0
    %121 = vmatpush2.msra.mxu0 0.0
    %122 = vmatprep.subr.mxu0 0.0
    %123 = vmatpush2.msra.mxu0 0.0
    %124 = vmatprep.subr.mxu0 0.0
    %125 = vmatpush2.msra.mxu0 0.0
    %126 = vmatprep.subr.mxu0 0.0
    %127 = vmatpush2.msra.mxu0 0.0
    %128 = vmatprep.subr.mxu0 0.0
    %129 = vmatpush2.msra.mxu0 0.0
    %130 = vmatprep.subr.mxu0 0.0
    %131 = vmatpush2.msra.mxu0 0.0
    %132 = vmatprep.subr.mxu0 0.0
    %133 = vmatpush2.msra.mxu0 0.0
    %134 = vmatprep.subr.mxu0 0.0
    %135 = vmatpush2.msra.mxu0 0.0
    %136 = vmatprep.subr.mxu0 0.0
    %137 = vmatpush2.msra.mxu0 0.0
    %138 = vmatprep.subr.mxu0 0.0
    %139 = vmatpush2.msra.mxu0 0.0
    %140 = vmatprep.subr.mxu0 0.0
    %141 = vmatpush2.msra.mxu0 0.0
    %142 = vmatprep.subr.mxu0 0.0
    %143 = vmatpush2.msra.mxu0 0.0
    %144 = vmatprep.subr.mxu0 0.0
    %145 = vmatpush2.msra.mxu0 0.0
    %146 = vmatprep.subr.mxu0 0.0
    %147 = vmatpush2.msra.mxu0 0.0
    %148 = vmatprep.subr.mxu0 0.0
    %149 = vmatpush2.msra.mxu0 0.0
    %150 = vmatprep.mubr.f32.mxu0 0.0
    %151 = vmatmul.mubr.f32.gmra.mxu0 %v41
    %v152 = vpop.f32.mrf.mxu0
    %v153 = vadd.f32 %v79, %v152
    %v154 = vpop.f32.mrf.mxu0
    %v155 = vadd.f32 %v83, %v154
    %156 = vdwg.mxu0
    %v157 = vmax.f32 %v153, -0.5
    %v158 = vmax.f32 %v155, -0.5
    %v159 = vmin.f32 %v157, 0.5
    %v160 = vmin.f32 %v158, 0.5
    %161 = vst [vmem:[#allocation7] sm:$0xff] %v159
    %162 = vst [vmem:[#allocation7 + $0x8] sm:$0xff] %v160
    // Predicated region
    $region22: #{tpu_custom_call.1} parent=1 // pred_check
      _
    $region23: #{tpu_custom_call.1} parent=1 // pred_check_branch
      %164 = sbr.rel (0) target = $region25
    $region24: #{tpu_custom_call.1} parent=1 // pred_region
      %s166 = ssub.s32 256, 256
      %167 = vsyncadd [#allocation4], %s166
      %s169 = sshll.u32 [#allocation7], 4
      %s170 = int_to_ptr.vmem [resolvable:$true] %s169
      %172 = dma.vmem_to_hbm [thread:$0]  %s170, 256, %s3, [#allocation4]
    $region25: #{tpu_custom_call.1} parent=1 // pred_fallthru
      _
    // Predicated region
    $region26: #{tpu_custom_call.1} parent=1 // pred_check
      _
    $region27: #{tpu_custom_call.1} parent=1 // pred_check_branch
      %174 = sbr.rel (0) target = $region29
    $region28: #{tpu_custom_call.1} parent=1 // pred_region
      %175 = dma.done [#allocation4], 256
    $region29: #{tpu_custom_call.1} parent=1 // pred_fallthru
      _
    %176 = vsyncpa [#allocation3], 1
    %177 = vsyncpa [#allocation6], 1
    %178 = vsyncpa [#allocation4], 1

</llo_original>
